<compile_context>
chip_gen: v7x
topology: tpu7x:2x2x1
jax: 0.10.0
libtpu: 0.0.40
codegen_flags: <defaults>
</compile_context>

<pallas_src>
import functools

import jax
import jax.numpy as jnp
from jax import lax
from jax.experimental import pallas as pl
from jax.experimental.pallas import tpu as pltpu

NUM_RELATIONS = 5
NUM_BASES = 2
LATENT_DIM = (32, 32, 32, 32)
NUM_LAYERS = len(LATENT_DIM)
HID = 32                         # every latent dim is 32
C_TOTAL = NUM_LAYERS * HID       # 128 = concatenated hidden width
NUM_FEATURES = 4
NUM_CLASSES = 5
LSTM_HID = 16
GATES = 4 * LSTM_HID             # 64 gate pre-activations per direction
PAD_IN = 32                      # layer-0 one-hot input zero-padded 4 -> 32
LOGIT_PAD = 128                  # lane-dense logits slab width


def _round_up(v, m):
    return ((v + m - 1) // m) * m


def _vmem_limit_bytes(block_bytes):
    """VMEM cap derived from tile sizes, <= 75% of physical (v7x-safe)."""
    cap = 64 * 1024 * 1024                       # conservative default (v7x per-TC)
    try:
        cap = int(pltpu.get_tpu_info().vmem_capacity_bytes)
    except Exception:                            # best-effort hardware query
        pass
    want = 4 * int(block_bytes) + (4 << 20)      # double-buffered blocks + weights
    return int(min(cap * 3 // 4, max(32 << 20, want)))


# --------------------------------------------------------------------------
# Kernel 1: all four RGCN layers fused, grid over graph-batched blocks
# --------------------------------------------------------------------------
def rgcn_fused_kernel(x_ref, a_ref, wall_ref, bias_ref, o_ref):
    # x_ref   : (1, rows, 32)         f32   zero-padded one-hot node features
    # a_ref   : (1, L, rows, 2*rows)  bf16  per layer [A_basis0 | A_basis1],
    #                                       block-diagonal over the GB graphs in
    #                                       this block, mean-normalised per relation
    # wall_ref: (L, 32, 96)           bf16  per layer [basis_0 | basis_1 | W_root]
    # bias_ref: (L, 1, 32)            f32
    # o_ref   : (1, rows, 128)        f32   [h1 | h2 | h3 | h4]
    h = x_ref[0]
    outs = []
    for l in range(NUM_LAYERS):
        # stacked feature transform: one bf16 MXU matmul yields both basis
        # messages and the root term (f32 accumulation).
        hw = jnp.dot(h.astype(jnp.bfloat16), wall_ref[l],
                     preferred_element_type=jnp.float32)            # (rows, 96)
        root = hw[:, 2 * HID:3 * HID]
        # stack the two basis messages along sublanes so BOTH per-basis
        # aggregations become ONE bf16 MXU matmul with doubled contraction K.
        m = jnp.concatenate([hw[:, 0:HID], hw[:, HID:2 * HID]],
                            axis=0).astype(jnp.bfloat16)            # (2*rows, 32)
        agg = jnp.dot(a_ref[0, l], m, preferred_element_type=jnp.float32)
        h = jnp.tanh(agg + root + bias_ref[l])                      # f32 elementwise
        outs.append(h)
    # single lane-dense 128-wide store
    o_ref[...] = jnp.concatenate(outs, axis=1)[None]


def rgcn_fused(x_pad, a_comb, wall, bias):
    nb, rows, _ = x_pad.shape
    two_rows = a_comb.shape[-1]
    block_bytes = (NUM_LAYERS * rows * two_rows * 2   # bf16 adjacency block
                   + rows * PAD_IN * 4                # features block
                   + rows * C_TOTAL * 4)              # output block
    return pl.pallas_call(
        rgcn_fused_kernel,
        out_shape=jax.ShapeDtypeStruct((nb, rows, C_TOTAL), jnp.float32),
        grid=(nb,),
        in_specs=[
            pl.BlockSpec((1, rows, PAD_IN), lambda b: (b, 0, 0)),
            pl.BlockSpec((1, NUM_LAYERS, rows, two_rows), lambda b: (b, 0, 0, 0)),
            pl.BlockSpec((NUM_LAYERS, PAD_IN, 3 * HID), lambda b: (0, 0, 0)),
            pl.BlockSpec((NUM_LAYERS, 1, HID), lambda b: (0, 0, 0)),
        ],
        out_specs=pl.BlockSpec((1, rows, C_TOTAL), lambda b: (b, 0, 0)),
        compiler_params=pltpu.CompilerParams(
            dimension_semantics=("parallel",),         # graph blocks split across TCs
            vmem_limit_bytes=_vmem_limit_bytes(block_bytes)),
    )(x_pad, a_comb, wall, bias)


# --------------------------------------------------------------------------
# Kernel 2: bi-LSTM layer-attention scoring, gridded over node tiles
# --------------------------------------------------------------------------
def _lstm_attn_kernel(h_ref, wih_ref, whhf_ref, bf_ref, whhb_ref, bb_ref,
                      w3_ref, b3_ref, o_ref, *, n_real, tile_rows):
    # h_ref : (tn, 128)  concatenated per-layer hidden states [h1|h2|h3|h4]
    # wih_ref: (128, 512) block-diag input-gate weights, all timesteps x dirs
    # w3_ref: (128, 4)   block-diagonal copy of lin3's (32, 1) weight
    # o_ref : (1, 4)     accumulates score sums; softmax on the last tile
    t = pl.program_id(0)
    rid = lax.broadcasted_iota(jnp.int32, (tile_rows, 1), 0) + t * tile_rows
    valid = (rid < n_real).astype(jnp.float32)         # mask zero-padded node rows

    # ONE wide matmul computes the input-gate projections for all 4 timesteps
    # and both directions, hoisted out of the serial recurrence.
    zin = jnp.dot(h_ref[...], wih_ref[...], preferred_element_type=jnp.float32)

    def run_dir(whh, b, order, off):
        hs = [None] * NUM_LAYERS
        hh = jnp.zeros((tile_rows, LSTM_HID), jnp.float32)
        cc = jnp.zeros((tile_rows, LSTM_HID), jnp.float32)
        for step in order:                              # static unroll (4 steps)
            base = step * 2 * GATES + off
            z = (zin[:, base:base + GATES]
                 + jnp.dot(hh, whh, preferred_element_type=jnp.float32) + b)
            gi = jax.nn.sigmoid(z[:, 0:LSTM_HID])
            gf = jax.nn.sigmoid(z[:, LSTM_HID:2 * LSTM_HID])
            gg = jnp.tanh(z[:, 2 * LSTM_HID:3 * LSTM_HID])
            go = jax.nn.sigmoid(z[:, 3 * LSTM_HID:4 * LSTM_HID])
            cc = gf * cc + gi * gg
            hh = go * jnp.tanh(cc)
            hs[step] = hh
        return hs

    hs_f = run_dir(whhf_ref[...], bf_ref[...], list(range(NUM_LAYERS)), 0)
    hs_b = run_dir(whhb_ref[...], bb_ref[...],
                   list(range(NUM_LAYERS - 1, -1, -1)), GATES)

    # per-layer lstm output is [forward | backward]; lay all layers out
    # lane-dense (tn, 128) and do the 4 lin3 projections as ONE matmul.
    out_cat = jnp.concatenate(
        [hb for l in range(NUM_LAYERS) for hb in (hs_f[l], hs_b[l])], axis=1)
    proj = jnp.dot(out_cat, w3_ref[...], preferred_element_type=jnp.float32)
    partial = jnp.sum(proj * valid, axis=0, keepdims=True)            # (1, 4)

    @pl.when(t == 0)
    def _():
        o_ref[...] = jnp.zeros_like(o_ref)

    o_ref[...] += partial

    @pl.when(t == pl.num_programs(0) - 1)
    def _():
        scores = o_ref[...] * (1.0 / n_real) + b3_ref[...]
        m = jnp.max(scores, axis=-1, keepdims=True)
        e = jnp.exp(scores - m)
        o_ref[...] = e / jnp.sum(e, axis=-1, keepdims=True)


def lstm_attention(h_nodes, params, tile_rows=512):
    n = h_nodes.shape[0]
    tn = min(tile_rows, _round_up(n, 8))
    n_pad = _round_up(n, tn)
    h_pad = jnp.pad(h_nodes, ((0, n_pad - n), (0, 0)))
    kernel = functools.partial(_lstm_attn_kernel, n_real=n, tile_rows=tn)
    full = lambda shape: pl.BlockSpec(shape, lambda i, _s=shape: tuple(0 for _ in _s))
    return pl.pallas_call(
        kernel,
        out_shape=jax.ShapeDtypeStruct((1, NUM_LAYERS), jnp.float32),
        grid=(n_pad // tn,),
        in_specs=[
            pl.BlockSpec((tn, C_TOTAL), lambda i: (i, 0)),
            full((C_TOTAL, NUM_LAYERS * 2 * GATES)),
            full((LSTM_HID, GATES)), full((1, GATES)),
            full((LSTM_HID, GATES)), full((1, GATES)),
            full((C_TOTAL, NUM_LAYERS)), full((1, 1)),
        ],
        out_specs=pl.BlockSpec((1, NUM_LAYERS), lambda i: (0, 0)),
        compiler_params=pltpu.CompilerParams(
            dimension_semantics=("arbitrary",)),        # o_ref accumulates over tiles
    )(h_pad, params["wih_blk"], params["whh_f"], params["bf"],
      params["whh_b"], params["bb"], params["w3_blk"], params["b3"])


# --------------------------------------------------------------------------
# Kernel 3: attention scaling + MLP head, gridded over batch tiles
# --------------------------------------------------------------------------
def mlp_head_kernel(x_ref, scale_ref, w1_ref, b1_ref, w2_ref, b2_ref, o_ref):
    xs = x_ref[...] * scale_ref[...]                    # layer-attention scaling
    h = jnp.dot(xs, w1_ref[...], preferred_element_type=jnp.float32) + b1_ref[...]
    h = jnp.maximum(h, 0.0)
    # TODO(synk): F.dropout(p=0.5) is a no-op in eval mode; skipped.
    logits = jnp.dot(h, w2_ref[...], preferred_element_type=jnp.float32) + b2_ref[...]
    # padded logit columns carry a -1e30 bias -> log_softmax over the 128-lane
    # slab is exact for the first NUM_CLASSES columns (lane-dense store).
    m = jnp.max(logits, axis=-1, keepdims=True)
    z = logits - m
    lse = jnp.log(jnp.sum(jnp.exp(z), axis=-1, keepdims=True))
    o_ref[...] = z - lse


def mlp_head(g_feat, scale, params, tile_rows=512):
    b, fin = g_feat.shape
    tb = min(tile_rows, _round_up(b, 8))
    b_pad = _round_up(b, tb)
    x_pad = jnp.pad(g_feat, ((0, b_pad - b), (0, 0)))
    full = lambda shape: pl.BlockSpec(shape, lambda i, _s=shape: tuple(0 for _ in _s))
    out = pl.pallas_call(
        mlp_head_kernel,
        out_shape=jax.ShapeDtypeStruct((b_pad, LOGIT_PAD), jnp.float32),
        grid=(b_pad // tb,),
        in_specs=[
            pl.BlockSpec((tb, fin), lambda i: (i, 0)),
            full((1, fin)),
            full((fin, 128)), full((1, 128)),
            full((128, LOGIT_PAD)), full((1, LOGIT_PAD)),
        ],
        out_specs=pl.BlockSpec((tb, LOGIT_PAD), lambda i: (i, 0)),
        compiler_params=pltpu.CompilerParams(dimension_semantics=("parallel",)),
    )(x_pad, scale, params["w1"], params["b1"], params["w2_pad"], params["b2_pad"])
    return out[:b, :NUM_CLASSES]


# --------------------------------------------------------------------------
# Parameter setup (deterministic, synthetic) — plain JAX glue
# --------------------------------------------------------------------------
def _glorot(key, shape):
    fan_in, fan_out = shape[-2], shape[-1]
    lim = jnp.sqrt(6.0 / (fan_in + fan_out))
    return jax.random.uniform(key, shape, jnp.float32, -lim, lim)


def init_params(key):
    in_dims = (NUM_FEATURES,) + LATENT_DIM[:-1]
    wall, bias_all, comp_all = [], [], []
    for cin, cout in zip(in_dims, LATENT_DIM):
        key, k1, k2, k3 = jax.random.split(key, 4)
        basis = _glorot(k1, (NUM_BASES, cin, cout))          # basis weights
        comp = _glorot(k2, (NUM_RELATIONS, NUM_BASES))       # basis coefficients
        w_root = _glorot(k3, (cin, cout))
        # stacked [basis_0 | basis_1 | W_root]; zero-pad input dim to 32 so all
        # layers share one (32, 96) matmul (exact: layer-0 inputs are one-hot).
        w_cat = jnp.concatenate([basis[0], basis[1], w_root], axis=1)
        w_cat = jnp.pad(w_cat, ((0, PAD_IN - cin), (0, 0)))
        wall.append(w_cat)
        comp_all.append(comp)
        bias_all.append(jnp.zeros((1, cout), jnp.float32))
    params = {
        "wall": jnp.stack(wall).astype(jnp.bfloat16),   # (L, 32, 96) bf16 MXU inputs
        "bias": jnp.stack(bias_all),                    # (L, 1, 32)  f32
        "comp": jnp.stack(comp_all),                    # (L, 5, 2)
    }

    def lstm_dir(k):
        k1, k2, k3 = jax.random.split(k, 3)
        lim = 1.0 / (LSTM_HID ** 0.5)
        wih = jax.random.uniform(k1, (HID, GATES), jnp.float32, -lim, lim)
        whh = jax.random.uniform(k2, (LSTM_HID, GATES), jnp.float32, -lim, lim)
        b = jax.random.uniform(k3, (1, GATES), jnp.float32, -lim, lim)
        return wih, whh, b

    key, kf, kb, k3w, k1w, k2w = jax.random.split(key, 6)
    wih_f, whh_f, bf = lstm_dir(kf)
    wih_b, whh_b, bb = lstm_dir(kb)
    # block-diagonal (128, 512) weight: one MXU matmul computes the input-gate
    # projections for all 4 timesteps and both directions outside the recurrence.
    wih_blk = jnp.zeros((C_TOTAL, NUM_LAYERS * 2 * GATES), jnp.float32)
    for t in range(NUM_LAYERS):
        c0 = t * 2 * GATES
        wih_blk = wih_blk.at[t * HID:(t + 1) * HID, c0:c0 + GATES].set(wih_f)
        wih_blk = wih_blk.at[t * HID:(t + 1) * HID,
                             c0 + GATES:c0 + 2 * GATES].set(wih_b)
    params.update(wih_blk=wih_blk, whh_f=whh_f, bf=bf, whh_b=whh_b, bb=bb)

    w3 = _glorot(k3w, (2 * LSTM_HID, 1))                     # lin3: (32, 1)
    # block-diagonal layout -> all four per-layer lin3 projections in one matmul
    w3_blk = jnp.zeros((C_TOTAL, NUM_LAYERS), jnp.float32)
    for l in range(NUM_LAYERS):
        w3_blk = w3_blk.at[l * 2 * LSTM_HID:(l + 1) * 2 * LSTM_HID, l].set(w3[:, 0])
    params["w3_blk"] = w3_blk                                # (128, 4)
    params["b3"] = jnp.zeros((1, 1), jnp.float32)

    params["w1"] = _glorot(k1w, (2 * C_TOTAL, 128))
    params["b1"] = jnp.zeros((1, 128), jnp.float32)
    w2 = _glorot(k2w, (128, NUM_CLASSES))
    # lane-dense logits slab: zero-pad w2 columns, padded bias = -1e30
    params["w2_pad"] = jnp.pad(w2, ((0, 0), (0, LOGIT_PAD - NUM_CLASSES)))
    params["b2_pad"] = jnp.concatenate(
        [jnp.zeros((1, NUM_CLASSES), jnp.float32),
         jnp.full((1, LOGIT_PAD - NUM_CLASSES), -1e30, jnp.float32)], axis=1)
    return params


# --------------------------------------------------------------------------
# One-time graph preprocessing (hoisted out of the per-call forward)
# --------------------------------------------------------------------------
def preprocess_graphs(comp, x, adj, target_rows=128):
    # x  : (N, 4)  one-hot node features, nodes ordered graph-major
    # adj: (G, R, npg, npg) per-graph edge counts adj[g,r,dst,src]
    # target_rows=128 fills the v5e MXU M dim; 256 also fine on v6e/v7x.
    num_graphs, _, npg, _ = adj.shape
    n = x.shape[0]
    assert n == num_graphs * npg, "nodes must be ordered graph-major"

    gb = max(1, target_rows // npg)                  # graphs packed per grid block
    if num_graphs > 1:                               # keep >= 2 grid steps (v7x TCs)
        gb = min(gb, pl.cdiv(num_graphs, 2))
    nb = pl.cdiv(num_graphs, gb)
    g_pad = nb * gb
    rows = gb * npg

    adj = jnp.pad(adj, ((0, g_pad - num_graphs), (0, 0), (0, 0), (0, 0)))
    # RGCNConv(aggr='mean'): normalise each relation's rows by per-relation in-degree
    deg = jnp.sum(adj, axis=-1, keepdims=True)
    a_norm = adj / jnp.maximum(deg, 1.0)
    # fold the basis coefficients into the adjacency: B[g,l,k] = sum_r comp[l,r,k]*A_r
    bc = jnp.einsum("lrk,grij->glkij", comp, a_norm)            # (g_pad, L, 2, npg, npg)
    bc = bc.reshape(nb, gb, NUM_LAYERS, NUM_BASES, npg, npg)
    # pack the gb graphs of each block BLOCK-DIAGONALLY into lane-dense tiles
    eye = jnp.eye(gb, dtype=bc.dtype)
    bd = jnp.einsum("bglkij,gh->blkgihj", bc, eye)
    bd = bd.reshape(nb, NUM_LAYERS, NUM_BASES, rows, rows)
    # per layer [A_basis0 | A_basis1] so both aggregations fuse into one matmul
    a_comb = jnp.concatenate([bd[:, :, 0], bd[:, :, 1]], axis=-1).astype(jnp.bfloat16)
    # TODO(synk): for very large npg, stream a_comb per layer (extra grid axis /
    # pl.Buffered) instead of holding all L layers of one block resident in VMEM.

    x_pad = jnp.pad(x, ((0, g_pad * npg - n), (0, PAD_IN - NUM_FEATURES)))
    x_pad = x_pad.reshape(nb, rows, PAD_IN)

    # target-user / target-item rows (from the ORIGINAL node features).
    # NOTE: jnp.nonzero(size=...) pads with index 0 if fewer rows match; the
    # example builder guarantees exactly one user and one item row per subgraph.
    u_idx = jnp.nonzero(x[:, 0] == 1, size=num_graphs)[0]
    i_idx = jnp.nonzero(x[:, 1] == 1, size=num_graphs)[0]

    return dict(x_pad=x_pad, a_comb=a_comb, u_idx=u_idx, i_idx=i_idx,
                num_nodes=n, num_graphs=num_graphs)


# --------------------------------------------------------------------------
# LSTMAttentionIGMC forward (eval mode)
# --------------------------------------------------------------------------
def lstm_attention_igmc_forward(params, pre):
    # TODO(synk): dropout_adj(p=0.2) is training-only; identity in eval mode.
    n = pre["num_nodes"]
    h_blocks = rgcn_fused(pre["x_pad"], pre["a_comb"],
                          params["wall"], params["bias"])        # (nb, rows, 128)
    h_nodes = h_blocks.reshape(-1, C_TOTAL)[:n]                  # (N, 128) [h1|..|h4]
    # TODO(synk): h is written f32 and re-read by kernel 2; a bf16 read path or
    # fusing the LSTM scoring into kernel 1's epilogue would halve that traffic.

    attn = lstm_attention(h_nodes, params)                       # (1, 4) softmax wts

    g_feat = jnp.concatenate([h_nodes[pre["u_idx"]],
                              h_nodes[pre["i_idx"]]], axis=1)    # (B, 256)
    # expand the 4 layer-attention weights over the 256 gathered channels
    scale = jnp.repeat(attn[0], HID)                             # (128,)
    scale = jnp.concatenate([scale, scale]).reshape(1, 2 * C_TOTAL)
    # TODO(synk): the target-row gather could be fused into mlp_head via
    # PrefetchScalarGridSpec + pl.Element row blocks at large batch sizes.
    return mlp_head(g_feat, scale, params)                       # (B, C) log-probs


# --------------------------------------------------------------------------
# Synthetic example (IGMC-style enclosing subgraphs, block-diagonal adjacency)
# --------------------------------------------------------------------------
def build_example(key, num_graphs=2, nodes_per_graph=8):
    # node 0 = target user (feat 0), node 1 = target item (feat 1), the rest
    # alternate 1-hop users/items; each 1-hop node links to both targets and
    # the target pair is linked.
    feat_idx = []
    for _ in range(num_graphs):
        feat_idx += [0, 1] + [2 + (i % 2) for i in range(nodes_per_graph - 2)]
    x = jax.nn.one_hot(jnp.array(feat_idx), NUM_FEATURES, dtype=jnp.float32)

    src, dst = [], []
    for j in range(2, nodes_per_graph):
        for hub in (0, 1):
            src += [hub, j]
            dst += [j, hub]
    src += [0, 1]
    dst += [1, 0]
    src = jnp.array(src, jnp.int32)
    dst = jnp.array(dst, jnp.int32)

    adj = jnp.zeros((num_graphs, NUM_RELATIONS, nodes_per_graph, nodes_per_graph),
                    jnp.float32)
    for g in range(num_graphs):
        key, k_et = jax.random.split(key)
        edge_type = jax.random.randint(k_et, (src.shape[0],), 0, NUM_RELATIONS)
        adj = adj.at[g, edge_type, dst, src].add(1.0)
    return x, adj


if __name__ == "__main__":
    key = jax.random.PRNGKey(0)
    key, k_params, k_data = jax.random.split(key, 3)

    num_graphs, nodes_per_graph = 2, 8
    params = init_params(k_params)
    x, adj = build_example(k_data, num_graphs, nodes_per_graph)

    # exactly one target user / target item row per enclosing subgraph
    assert int(jnp.sum(x[:, 0] == 1)) == num_graphs
    assert int(jnp.sum(x[:, 1] == 1)) == num_graphs

    pre = preprocess_graphs(params["comp"], x, adj)      # hoisted, reusable per graph set
    out = lstm_attention_igmc_forward(params, pre)
    out = jax.block_until_ready(out)

    assert out.shape == (num_graphs, NUM_CLASSES)
    assert bool(jnp.all(jnp.isfinite(out)))
    # rows of log_softmax must (approximately) exponentiate-sum to 1
    assert bool(jnp.all(jnp.abs(jnp.sum(jnp.exp(out), axis=-1) - 1.0) < 1e-4))
    print("KERNEL_OK")
</pallas_src>

<mosaic_0001>
module attributes {stable_mosaic.version = 11 : i64} {
  func.func @rgcn_fused_kernel(%arg0: i32, %arg1: memref<1x8x32xf32, #tpu.memory_space<vmem>>, %arg2: memref<1x4x8x16xbf16, #tpu.memory_space<vmem>>, %arg3: memref<4x32x96xbf16, #tpu.memory_space<vmem>>, %arg4: memref<4x1x32xf32, #tpu.memory_space<vmem>>, %arg5: memref<1x8x128xf32, #tpu.memory_space<vmem>>) attributes {dimension_semantics = [#tpu.dimension_semantics<parallel>], iteration_bounds = array<i64: 2>, scalar_prefetch = 0 : i64, scratch_operands = 0 : i64, tpu.core_type = #tpu.core_type<tc>, window_params = [{transform_indices = @transform_0, window_bounds = array<i64: 1, 8, 32>}, {transform_indices = @transform_1, window_bounds = array<i64: 1, 4, 8, 16>}, {pipeline_mode = #tpu.pipeline_mode<synchronous>, transform_indices = @transform_2, window_bounds = array<i64: 4, 32, 96>}, {pipeline_mode = #tpu.pipeline_mode<synchronous>, transform_indices = @transform_3, window_bounds = array<i64: 4, 1, 32>}, {transform_indices = @transform_4, window_bounds = array<i64: 1, 8, 128>}]} {
    %c0 = arith.constant 0 : index
    %c0_0 = arith.constant 0 : index
    %c0_1 = arith.constant 0 : index
    %0 = vector.load %arg1[%c0, %c0_0, %c0_1] : memref<1x8x32xf32, #tpu.memory_space<vmem>>, vector<1x8x32xf32>
    %1 = vector.shape_cast %0 : vector<1x8x32xf32> to vector<8x32xf32>
    %2 = arith.truncf %1 : vector<8x32xf32> to vector<8x32xbf16>
    %c0_2 = arith.constant 0 : index
    %c0_3 = arith.constant 0 : index
    %c0_4 = arith.constant 0 : index
    %3 = vector.load %arg3[%c0_2, %c0_3, %c0_4] : memref<4x32x96xbf16, #tpu.memory_space<vmem>>, vector<1x32x96xbf16>
    %4 = vector.shape_cast %3 : vector<1x32x96xbf16> to vector<32x96xbf16>
    %cst = arith.constant dense<0.000000e+00> : vector<8x96xf32>
    %5 = tpu.matmul %2, %4, %cst {dimension_numbers = #tpu.dot_dimension_numbers<[1], [0], [0], [1], [0, 0, 1, 1], [], []>} : vector<8x32xbf16>, vector<32x96xbf16>, vector<8x96xf32> -> vector<8x96xf32>
    %6 = vector.extract_strided_slice %5 {offsets = [0, 64], sizes = [8, 32], strides = [1, 1]} : vector<8x96xf32> to vector<8x32xf32>
    %7 = vector.extract_strided_slice %5 {offsets = [0, 0], sizes = [8, 32], strides = [1, 1]} : vector<8x96xf32> to vector<8x32xf32>
    %8 = vector.extract_strided_slice %5 {offsets = [0, 32], sizes = [8, 32], strides = [1, 1]} : vector<8x96xf32> to vector<8x32xf32>
    %9 = tpu.concatenate %7, %8 in 0 : vector<8x32xf32>, vector<8x32xf32> -> vector<16x32xf32>
    %10 = arith.truncf %9 : vector<16x32xf32> to vector<16x32xbf16>
    %c0_5 = arith.constant 0 : index
    %c0_6 = arith.constant 0 : index
    %c0_7 = arith.constant 0 : index
    %c0_8 = arith.constant 0 : index
    %11 = vector.load %arg2[%c0_5, %c0_6, %c0_7, %c0_8] : memref<1x4x8x16xbf16, #tpu.memory_space<vmem>>, vector<1x1x8x16xbf16>
    %12 = vector.shape_cast %11 : vector<1x1x8x16xbf16> to vector<8x16xbf16>
    %cst_9 = arith.constant dense<0.000000e+00> : vector<8x32xf32>
    %13 = tpu.matmul %12, %10, %cst_9 {dimension_numbers = #tpu.dot_dimension_numbers<[1], [0], [0], [1], [0, 0, 1, 1], [], []>} : vector<8x16xbf16>, vector<16x32xbf16>, vector<8x32xf32> -> vector<8x32xf32>
    %14 = arith.addf %13, %6 : vector<8x32xf32>
    %c0_10 = arith.constant 0 : index
    %c0_11 = arith.constant 0 : index
    %c0_12 = arith.constant 0 : index
    %15 = vector.load %arg4[%c0_10, %c0_11, %c0_12] : memref<4x1x32xf32, #tpu.memory_space<vmem>>, vector<1x1x32xf32>
    %16 = vector.shape_cast %15 : vector<1x1x32xf32> to vector<1x32xf32>
    %17 = vector.broadcast %16 : vector<1x32xf32> to vector<8x32xf32>
    %18 = arith.addf %14, %17 : vector<8x32xf32>
    %19 = math.tanh %18 : vector<8x32xf32>
    %20 = arith.truncf %19 : vector<8x32xf32> to vector<8x32xbf16>
    %c1 = arith.constant 1 : index
    %c0_13 = arith.constant 0 : index
    %c0_14 = arith.constant 0 : index
    %21 = vector.load %arg3[%c1, %c0_13, %c0_14] : memref<4x32x96xbf16, #tpu.memory_space<vmem>>, vector<1x32x96xbf16>
    %22 = vector.shape_cast %21 : vector<1x32x96xbf16> to vector<32x96xbf16>
    %cst_15 = arith.constant dense<0.000000e+00> : vector<8x96xf32>
    %23 = tpu.matmul %20, %22, %cst_15 {dimension_numbers = #tpu.dot_dimension_numbers<[1], [0], [0], [1], [0, 0, 1, 1], [], []>} : vector<8x32xbf16>, vector<32x96xbf16>, vector<8x96xf32> -> vector<8x96xf32>
    %24 = vector.extract_strided_slice %23 {offsets = [0, 64], sizes = [8, 32], strides = [1, 1]} : vector<8x96xf32> to vector<8x32xf32>
    %25 = vector.extract_strided_slice %23 {offsets = [0, 0], sizes = [8, 32], strides = [1, 1]} : vector<8x96xf32> to vector<8x32xf32>
    %26 = vector.extract_strided_slice %23 {offsets = [0, 32], sizes = [8, 32], strides = [1, 1]} : vector<8x96xf32> to vector<8x32xf32>
    %27 = tpu.concatenate %25, %26 in 0 : vector<8x32xf32>, vector<8x32xf32> -> vector<16x32xf32>
    %28 = arith.truncf %27 : vector<16x32xf32> to vector<16x32xbf16>
    %c0_16 = arith.constant 0 : index
    %c1_17 = arith.constant 1 : index
    %c0_18 = arith.constant 0 : index
    %c0_19 = arith.constant 0 : index
    %29 = vector.load %arg2[%c0_16, %c1_17, %c0_18, %c0_19] : memref<1x4x8x16xbf16, #tpu.memory_space<vmem>>, vector<1x1x8x16xbf16>
    %30 = vector.shape_cast %29 : vector<1x1x8x16xbf16> to vector<8x16xbf16>
    %cst_20 = arith.constant dense<0.000000e+00> : vector<8x32xf32>
    %31 = tpu.matmul %30, %28, %cst_20 {dimension_numbers = #tpu.dot_dimension_numbers<[1], [0], [0], [1], [0, 0, 1, 1], [], []>} : vector<8x16xbf16>, vector<16x32xbf16>, vector<8x32xf32> -> vector<8x32xf32>
    %32 = arith.addf %31, %24 : vector<8x32xf32>
    %c1_21 = arith.constant 1 : index
    %c0_22 = arith.constant 0 : index
    %c0_23 = arith.constant 0 : index
    %33 = vector.load %arg4[%c1_21, %c0_22, %c0_23] : memref<4x1x32xf32, #tpu.memory_space<vmem>>, vector<1x1x32xf32>
    %34 = vector.shape_cast %33 : vector<1x1x32xf32> to vector<1x32xf32>
    %35 = vector.broadcast %34 : vector<1x32xf32> to vector<8x32xf32>
    %36 = arith.addf %32, %35 : vector<8x32xf32>
    %37 = math.tanh %36 : vector<8x32xf32>
    %38 = arith.truncf %37 : vector<8x32xf32> to vector<8x32xbf16>
    %c2 = arith.constant 2 : index
    %c0_24 = arith.constant 0 : index
    %c0_25 = arith.constant 0 : index
    %39 = vector.load %arg3[%c2, %c0_24, %c0_25] : memref<4x32x96xbf16, #tpu.memory_space<vmem>>, vector<1x32x96xbf16>
    %40 = vector.shape_cast %39 : vector<1x32x96xbf16> to vector<32x96xbf16>
    %cst_26 = arith.constant dense<0.000000e+00> : vector<8x96xf32>
    %41 = tpu.matmul %38, %40, %cst_26 {dimension_numbers = #tpu.dot_dimension_numbers<[1], [0], [0], [1], [0, 0, 1, 1], [], []>} : vector<8x32xbf16>, vector<32x96xbf16>, vector<8x96xf32> -> vector<8x96xf32>
    %42 = vector.extract_strided_slice %41 {offsets = [0, 64], sizes = [8, 32], strides = [1, 1]} : vector<8x96xf32> to vector<8x32xf32>
    %43 = vector.extract_strided_slice %41 {offsets = [0, 0], sizes = [8, 32], strides = [1, 1]} : vector<8x96xf32> to vector<8x32xf32>
    %44 = vector.extract_strided_slice %41 {offsets = [0, 32], sizes = [8, 32], strides = [1, 1]} : vector<8x96xf32> to vector<8x32xf32>
    %45 = tpu.concatenate %43, %44 in 0 : vector<8x32xf32>, vector<8x32xf32> -> vector<16x32xf32>
    %46 = arith.truncf %45 : vector<16x32xf32> to vector<16x32xbf16>
    %c0_27 = arith.constant 0 : index
    %c2_28 = arith.constant 2 : index
    %c0_29 = arith.constant 0 : index
    %c0_30 = arith.constant 0 : index
    %47 = vector.load %arg2[%c0_27, %c2_28, %c0_29, %c0_30] : memref<1x4x8x16xbf16, #tpu.memory_space<vmem>>, vector<1x1x8x16xbf16>
    %48 = vector.shape_cast %47 : vector<1x1x8x16xbf16> to vector<8x16xbf16>
    %cst_31 = arith.constant dense<0.000000e+00> : vector<8x32xf32>
    %49 = tpu.matmul %48, %46, %cst_31 {dimension_numbers = #tpu.dot_dimension_numbers<[1], [0], [0], [1], [0, 0, 1, 1], [], []>} : vector<8x16xbf16>, vector<16x32xbf16>, vector<8x32xf32> -> vector<8x32xf32>
    %50 = arith.addf %49, %42 : vector<8x32xf32>
    %c2_32 = arith.constant 2 : index
    %c0_33 = arith.constant 0 : index
    %c0_34 = arith.constant 0 : index
    %51 = vector.load %arg4[%c2_32, %c0_33, %c0_34] : memref<4x1x32xf32, #tpu.memory_space<vmem>>, vector<1x1x32xf32>
    %52 = vector.shape_cast %51 : vector<1x1x32xf32> to vector<1x32xf32>
    %53 = vector.broadcast %52 : vector<1x32xf32> to vector<8x32xf32>
    %54 = arith.addf %50, %53 : vector<8x32xf32>
    %55 = math.tanh %54 : vector<8x32xf32>
    %56 = arith.truncf %55 : vector<8x32xf32> to vector<8x32xbf16>
    %c3 = arith.constant 3 : index
    %c0_35 = arith.constant 0 : index
    %c0_36 = arith.constant 0 : index
    %57 = vector.load %arg3[%c3, %c0_35, %c0_36] : memref<4x32x96xbf16, #tpu.memory_space<vmem>>, vector<1x32x96xbf16>
    %58 = vector.shape_cast %57 : vector<1x32x96xbf16> to vector<32x96xbf16>
    %cst_37 = arith.constant dense<0.000000e+00> : vector<8x96xf32>
    %59 = tpu.matmul %56, %58, %cst_37 {dimension_numbers = #tpu.dot_dimension_numbers<[1], [0], [0], [1], [0, 0, 1, 1], [], []>} : vector<8x32xbf16>, vector<32x96xbf16>, vector<8x96xf32> -> vector<8x96xf32>
    %60 = vector.extract_strided_slice %59 {offsets = [0, 64], sizes = [8, 32], strides = [1, 1]} : vector<8x96xf32> to vector<8x32xf32>
    %61 = vector.extract_strided_slice %59 {offsets = [0, 0], sizes = [8, 32], strides = [1, 1]} : vector<8x96xf32> to vector<8x32xf32>
    %62 = vector.extract_strided_slice %59 {offsets = [0, 32], sizes = [8, 32], strides = [1, 1]} : vector<8x96xf32> to vector<8x32xf32>
    %63 = tpu.concatenate %61, %62 in 0 : vector<8x32xf32>, vector<8x32xf32> -> vector<16x32xf32>
    %64 = arith.truncf %63 : vector<16x32xf32> to vector<16x32xbf16>
    %c0_38 = arith.constant 0 : index
    %c3_39 = arith.constant 3 : index
    %c0_40 = arith.constant 0 : index
    %c0_41 = arith.constant 0 : index
    %65 = vector.load %arg2[%c0_38, %c3_39, %c0_40, %c0_41] : memref<1x4x8x16xbf16, #tpu.memory_space<vmem>>, vector<1x1x8x16xbf16>
    %66 = vector.shape_cast %65 : vector<1x1x8x16xbf16> to vector<8x16xbf16>
    %cst_42 = arith.constant dense<0.000000e+00> : vector<8x32xf32>
    %67 = tpu.matmul %66, %64, %cst_42 {dimension_numbers = #tpu.dot_dimension_numbers<[1], [0], [0], [1], [0, 0, 1, 1], [], []>} : vector<8x16xbf16>, vector<16x32xbf16>, vector<8x32xf32> -> vector<8x32xf32>
    %68 = arith.addf %67, %60 : vector<8x32xf32>
    %c3_43 = arith.constant 3 : index
    %c0_44 = arith.constant 0 : index
    %c0_45 = arith.constant 0 : index
    %69 = vector.load %arg4[%c3_43, %c0_44, %c0_45] : memref<4x1x32xf32, #tpu.memory_space<vmem>>, vector<1x1x32xf32>
    %70 = vector.shape_cast %69 : vector<1x1x32xf32> to vector<1x32xf32>
    %71 = vector.broadcast %70 : vector<1x32xf32> to vector<8x32xf32>
    %72 = arith.addf %68, %71 : vector<8x32xf32>
    %73 = math.tanh %72 : vector<8x32xf32>
    %74 = tpu.concatenate %19, %37, %55, %73 in 1 : vector<8x32xf32>, vector<8x32xf32>, vector<8x32xf32>, vector<8x32xf32> -> vector<8x128xf32>
    %75 = vector.shape_cast %74 : vector<8x128xf32> to vector<1x8x128xf32>
    %c0_46 = arith.constant 0 : index
    %c0_47 = arith.constant 0 : index
    %c0_48 = arith.constant 0 : index
    %76 = vector.load %arg5[%c0_46, %c0_47, %c0_48] : memref<1x8x128xf32, #tpu.memory_space<vmem>>, vector<1x8x128xf32>
    tpu.vector_store %arg5[%c0_46, %c0_47, %c0_48], %75 {strides = array<i32>} : memref<1x8x128xf32, #tpu.memory_space<vmem>>, vector<1x8x128xf32>,
    return
  }
  func.func @transform_0(%arg0: i32) -> (i32, i32, i32) {
    %c0_i32 = arith.constant 0 : i32
    %c0_i32_0 = arith.constant 0 : i32
    %c0_i32_1 = arith.constant 0 : i32
    return %arg0, %c0_i32, %c0_i32_0 : i32, i32, i32
  }
  func.func @transform_1(%arg0: i32) -> (i32, i32, i32, i32) {
    %c0_i32 = arith.constant 0 : i32
    %c0_i32_0 = arith.constant 0 : i32
    %c0_i32_1 = arith.constant 0 : i32
    %c0_i32_2 = arith.constant 0 : i32
    return %arg0, %c0_i32, %c0_i32_0, %c0_i32_1 : i32, i32, i32, i32
  }
  func.func @transform_2(%arg0: i32) -> (i32, i32, i32) {
    %c0_i32 = arith.constant 0 : i32
    %c0_i32_0 = arith.constant 0 : i32
    %c0_i32_1 = arith.constant 0 : i32
    %c0_i32_2 = arith.constant 0 : i32
    return %c0_i32, %c0_i32_0, %c0_i32_1 : i32, i32, i32
  }
  func.func @transform_3(%arg0: i32) -> (i32, i32, i32) {
    %c0_i32 = arith.constant 0 : i32
    %c0_i32_0 = arith.constant 0 : i32
    %c0_i32_1 = arith.constant 0 : i32
    %c0_i32_2 = arith.constant 0 : i32
    return %c0_i32, %c0_i32_0, %c0_i32_1 : i32, i32, i32
  }
  func.func @transform_4(%arg0: i32) -> (i32, i32, i32) {
    %c0_i32 = arith.constant 0 : i32
    %c0_i32_0 = arith.constant 0 : i32
    %c0_i32_1 = arith.constant 0 : i32
    return %arg0, %c0_i32, %c0_i32_0 : i32, i32, i32
  }
}

</mosaic_0001>

<llo_original>
// kernel: tpu_custom_call.1
$region0: #{tpu_custom_call.1}
  #allocation0 [shape = 'u32[]', space=smem, size = 0x4, offset = 0x4, fixed_abs, tag = 'smem constant byte address 0x4 - core index']
  #allocation1 [shape = 'u32[144,128]{1,0:T(1,128)}', space=vmem, size = 0x12000, scoped, tag = 'internal scratch']
  %s0 = inlined_call_operand.hbm [shape: f32[2,8,32], index: 0, kind: input, shape index: {}]
  %s1 = inlined_call_operand.hbm [shape: bf16[2,4,8,16], index: 1, kind: input, shape index: {}]
  %s2 = inlined_call_operand.hbm [shape: bf16[4,32,96], index: 2, kind: input, shape index: {}]
  %s3 = inlined_call_operand.vmem [shape: f32[4,1,32], index: 3, kind: input, shape index: {}]
  %s4 = inlined_call_operand.hbm [shape: f32[2,8,128], index: 4, kind: output, shape index: {}]
  %s5 = sld [smem:[#allocation0]]
  $region61: #{tpu_custom_call.1} parent=0
    _
  %s7 = ssub.s32 1, %s5
  %s8 = scalar_select 0, %s7, %s5
  $region1: #{tpu_custom_call.1} parent=0
    #allocation2 [shape = 'u8[8192]{0}', space=vmem, size = 0x2000, scoped, tag = 'input window, operand 0']
    #allocation3 [shape = 's32[2]{0}', space=sflag, size = 0x8, scoped, tag = 'scoped memory for tpu_custom_call.1']
    #allocation4 [shape = 's32[2]{0}', space=sflag, size = 0x8, scoped, tag = 'scoped memory for tpu_custom_call.1']
    #allocation5 [shape = 'u8[16384]{0}', space=vmem, size = 0x4000, scoped, tag = 'input window, operand 1']
    #allocation6 [shape = 's32[2]{0}', space=sflag, size = 0x8, scoped, tag = 'scoped memory for tpu_custom_call.1']
    #allocation7 [shape = 'u8[32768]{0}', space=vmem, size = 0x8000, scoped, tag = 'input window, operand 2, single buffered']
    #allocation8 [shape = 'u8[8192]{0}', space=vmem, size = 0x2000, scoped, tag = 'output window, operand 0']
    %9 = vsyncpa [#allocation3], 0
    %s10 = scalar_lea.sflag [#allocation3], 1
    %11 = vsyncpa %s10, 0
    %12 = vsyncpa [#allocation6], 0
    %s13 = scalar_lea.sflag [#allocation6], 1
    %14 = vsyncpa %s13, 0
    %15 = vsyncpa [#allocation4], 0
    %s16 = scalar_lea.sflag [#allocation4], 1
    %17 = vsyncpa %s16, 0
    loop: start=0, step=1, limit=4
    $region2: #{tpu_custom_call.1} parent=1 // loop_pre_header
      _
    $region3: #{tpu_custom_call.1} parent=1 // loop_header
      %s19 = sphi 0, %s23
      %p20 = scmp.ge.s32.totalorder %s19, 4
      %s29 = sphi 0, %s31
      %s32 = sphi 0, %s29
      %s33 = sphi 0, %s32
      %s49 = sphi 0, %s33
      %s55 = sphi 0, %s57
      %s58 = sphi 0, %s55
      %s59 = sphi 0, %s58
      %s75 = sphi 0, %s59
      %s79 = sphi 0, %s79
      %s81 = sphi 0, %s79
      %s82 = sphi 0, %s81
      %s96 = sphi 0, %s82
      %s100 = sphi 0, %s100
      %s102 = sphi 0, %s100
      %s103 = sphi 0, %s102
      %s117 = sphi 0, %s103
      %s123 = sphi 0, %s125
      %s126 = sphi 0, %s123
      %s127 = sphi 0, %s126
      %s143 = sphi 0, %s127
    $region4: #{tpu_custom_call.1} parent=1 // loop_header_branch
      %22 = sbr.rel (%p20) target = $region8
    $region5: #{tpu_custom_call.1} parent=1 // loop_body
      %s24 = ssub.s32 %s19, 1
      %s25 = ssub.s32 %s19, 2
      %s26 = sadd.s32 %s19, 1
      %s27 = ssub.s32 %s19, %s26
      %p28 = scmp.eq.s32.totalorder %s27, 0
      %s30 = sadd.s32 %s29, 1
      %s31 = scalar_select %p28, %s29, %s30
      %p34 = pneg %p28
      %p35 = scmp.eq.s32.totalorder %s19, 1
      %p36 = por %p34, %p35
      %p37 = scmp.ne.s32.totalorder %s29, %s32
      %p38 = scmp.eq.s32.totalorder %s19, 0
      %p39 = por %p37, %p38
      %p40 = scmp.ne.s32.totalorder %s29, %s32
      %p41 = scmp.eq.s32.totalorder %s24, 1
      %p42 = por %p40, %p41
      %p43 = scmp.ne.s32.totalorder %s32, %s33
      %p44 = scmp.eq.s32.totalorder %s24, 0
      %p45 = por %p43, %p44
      %p46 = scmp.ne.s32.totalorder %s32, %s33
      %p47 = scmp.eq.s32.totalorder %s25, 1
      %p48 = por %p46, %p47
      %p50 = scmp.ne.s32.totalorder %s33, %s49
      %p51 = scmp.eq.s32.totalorder %s25, 0
      %p52 = por %p50, %p51
      %s53 = ssub.s32 %s19, %s26
      %p54 = scmp.eq.s32.totalorder %s53, 0
      %s56 = sadd.s32 %s55, 1
      %s57 = scalar_select %p54, %s55, %s56
      %p60 = pneg %p54
      %p61 = scmp.eq.s32.totalorder %s19, 1
      %p62 = por %p60, %p61
      %p63 = scmp.ne.s32.totalorder %s55, %s58
      %p64 = scmp.eq.s32.totalorder %s19, 0
      %p65 = por %p63, %p64
      %p66 = scmp.ne.s32.totalorder %s55, %s58
      %p67 = scmp.eq.s32.totalorder %s24, 1
      %p68 = por %p66, %p67
      %p69 = scmp.ne.s32.totalorder %s58, %s59
      %p70 = scmp.eq.s32.totalorder %s24, 0
      %p71 = por %p69, %p70
      %p72 = scmp.ne.s32.totalorder %s58, %s59
      %p73 = scmp.eq.s32.totalorder %s25, 1
      %p74 = por %p72, %p73
      %p76 = scmp.ne.s32.totalorder %s59, %s75
      %p77 = scmp.eq.s32.totalorder %s25, 0
      %p78 = por %p76, %p77
      %s80 = sadd.s32 %s79, 1
      %p83 = scmp.eq.s32.totalorder %s19, 1
      %p84 = scmp.ne.s32.totalorder %s79, %s81
      %p85 = scmp.eq.s32.totalorder %s19, 0
      %p86 = por %p84, %p85
      %p87 = scmp.ne.s32.totalorder %s79, %s81
      %p88 = scmp.eq.s32.totalorder %s24, 1
      %p89 = por %p87, %p88
      %p90 = scmp.ne.s32.totalorder %s81, %s82
      %p91 = scmp.eq.s32.totalorder %s24, 0
      %p92 = por %p90, %p91
      %p93 = scmp.ne.s32.totalorder %s81, %s82
      %p94 = scmp.eq.s32.totalorder %s25, 1
      %p95 = por %p93, %p94
      %p97 = scmp.ne.s32.totalorder %s82, %s96
      %p98 = scmp.eq.s32.totalorder %s25, 0
      %p99 = por %p97, %p98
      %s101 = sadd.s32 %s100, 1
      %p104 = scmp.eq.s32.totalorder %s19, 1
      %p105 = scmp.ne.s32.totalorder %s100, %s102
      %p106 = scmp.eq.s32.totalorder %s19, 0
      %p107 = por %p105, %p106
      %p108 = scmp.ne.s32.totalorder %s100, %s102
      %p109 = scmp.eq.s32.totalorder %s24, 1
      %p110 = por %p108, %p109
      %p111 = scmp.ne.s32.totalorder %s102, %s103
      %p112 = scmp.eq.s32.totalorder %s24, 0
      %p113 = por %p111, %p112
      %p114 = scmp.ne.s32.totalorder %s102, %s103
      %p115 = scmp.eq.s32.totalorder %s25, 1
      %p116 = por %p114, %p115
      %p118 = scmp.ne.s32.totalorder %s103, %s117
      %p119 = scmp.eq.s32.totalorder %s25, 0
      %p120 = por %p118, %p119
      %s121 = ssub.s32 %s19, %s26
      %p122 = scmp.eq.s32.totalorder %s121, 0
      %s124 = sadd.s32 %s123, 1
      %s125 = scalar_select %p122, %s123, %s124
      %p128 = pneg %p122
      %p129 = scmp.eq.s32.totalorder %s19, 1
      %p130 = por %p128, %p129
      %p131 = scmp.ne.s32.totalorder %s123, %s126
      %p132 = scmp.eq.s32.totalorder %s19, 0
      %p133 = por %p131, %p132
      %p134 = scmp.ne.s32.totalorder %s123, %s126
      %p135 = scmp.eq.s32.totalorder %s24, 1
      %p136 = por %p134, %p135
      %p137 = scmp.ne.s32.totalorder %s126, %s127
      %p138 = scmp.eq.s32.totalorder %s24, 0
      %p139 = por %p137, %p138
      %p140 = scmp.ne.s32.totalorder %s126, %s127
      %p141 = scmp.eq.s32.totalorder %s25, 1
      %p142 = por %p140, %p141
      %p144 = scmp.ne.s32.totalorder %s127, %s143
      %p145 = scmp.eq.s32.totalorder %s25, 0
      %p146 = por %p144, %p145
      %p147 = scmp.le.s32.totalorder 1, %s19
      %p148 = scmp.lt.s32.totalorder %s19, 3
      %p149 = pnand %p147, %p148
      %p150 = pneg %p149
      // Predicated region
      $region9: #{tpu_custom_call.1} parent=5 // pred_check
        _
      $region10: #{tpu_custom_call.1} parent=5 // pred_check_branch
        %152 = sbr.rel (%p149) target = $region12
      $region11: #{tpu_custom_call.1} parent=5 // pred_region
        %s153 = ssub.s32 %s19, 1
        // Predicated region
        $region13: #{tpu_custom_call.1} parent=11 // pred_check
          %p154 = pneg %p92
        $region14: #{tpu_custom_call.1} parent=11 // pred_check_branch
          %156 = sbr.rel (%p154) target = $region16
        $region15: #{tpu_custom_call.1} parent=11 // pred_region
          %s158 = ssub.s32 1024, 1024
          %159 = vsyncadd [#allocation6], %s158
          %s160 = sshll.u32 [#allocation7], 4
          %s161 = int_to_ptr.vmem [resolvable:$true] %s160
          %166 = dma.hbm_to_vmem [thread:$0]  %s2, 1024, %s161, [#allocation6], 64, 64, 4
        $region16: #{tpu_custom_call.1} parent=11 // pred_fallthru
          _
        // Predicated region
        $region17: #{tpu_custom_call.1} parent=11 // pred_check
          %p167 = pneg %p113
        $region18: #{tpu_custom_call.1} parent=11 // pred_check_branch
          %169 = sbr.rel (%p167) target = $region20
        $region19: #{tpu_custom_call.1} parent=11 // pred_region
          _
        $region20: #{tpu_custom_call.1} parent=11 // pred_fallthru
          _
      $region12: #{tpu_custom_call.1} parent=5 // pred_fallthru
        _
      %p170 = scmp.lt.s32.totalorder %s19, 2
      // Predicated region
      $region21: #{tpu_custom_call.1} parent=5 // pred_check
        %p171 = pneg %p170
      $region22: #{tpu_custom_call.1} parent=5 // pred_check_branch
        %173 = sbr.rel (%p171) target = $region24
      $region23: #{tpu_custom_call.1} parent=5 // pred_region
        // Predicated region
        $region25: #{tpu_custom_call.1} parent=23 // pred_check
          %p174 = pneg %p39
        $region26: #{tpu_custom_call.1} parent=23 // pred_check_branch
          %176 = sbr.rel (%p174) target = $region28
        $region27: #{tpu_custom_call.1} parent=23 // pred_region
          %s177 = sand.u32 %s29, 1
          %s178 = scalar_lea.sflag [#allocation3], %s177
          %s179 = sand.u32 %s29, 1
          %s180 = smul.addr %s179, 8
          %s181 = scalar_lea.vmem [#allocation2], %s180
          %s183 = ssub.s32 128, 128
          %184 = vsyncadd %s178, %s183
          %s185 = smul.addr %s19, 128
          %s186 = scalar_lea.hbm %s0, %s185
          %s188 = sshll.u32 %s181, 4
          %s189 = int_to_ptr.vmem [resolvable:$true] %s188
          %191 = dma.hbm_to_vmem [thread:$0]  %s186, 128, %s189, %s178
        $region28: #{tpu_custom_call.1} parent=23 // pred_fallthru
          _
        // Predicated region
        $region29: #{tpu_custom_call.1} parent=23 // pred_check
          %p192 = pneg %p65
        $region30: #{tpu_custom_call.1} parent=23 // pred_check_branch
          %194 = sbr.rel (%p192) target = $region32
        $region31: #{tpu_custom_call.1} parent=23 // pred_region
          %s195 = sand.u32 %s19, 1
          %s196 = scalar_lea.sflag [#allocation6], %s195
          %s197 = sand.u32 %s55, 1
          %s198 = smul.addr %s197, 16
          %s199 = scalar_lea.vmem [#allocation5], %s198
          %s201 = ssub.s32 256, 256
          %202 = vsyncadd %s196, %s201
          %s203 = smul.addr %s19, 4
          %s204 = smul.addr %s203, 64
          %s205 = scalar_lea.hbm %s1, %s204
          %s206 = sshll.u32 %s199, 4
          %s207 = int_to_ptr.vmem [resolvable:$true] %s206
          %212 = dma.hbm_to_vmem [thread:$0]  %s205, 256, %s207, %s196, 64, 64, 4
        $region32: #{tpu_custom_call.1} parent=23 // pred_fallthru
          _
      $region24: #{tpu_custom_call.1} parent=5 // pred_fallthru
        _
      %p213 = scmp.le.s32.totalorder 1, %s19
      %p214 = scmp.lt.s32.totalorder %s19, 3
      %p215 = pnand %p213, %p214
      %p216 = pneg %p215
      // Predicated region
      $region33: #{tpu_custom_call.1} parent=5 // pred_check
        _
      $region34: #{tpu_custom_call.1} parent=5 // pred_check_branch
        %218 = sbr.rel (%p215) target = $region36
      $region35: #{tpu_custom_call.1} parent=5 // pred_region
        %s219 = ssub.s32 %s19, 1
        %s220 = sand.u32 %s32, 1
        %s221 = scalar_lea.sflag [#allocation3], %s220
        %s222 = sand.u32 %s32, 1
        %s223 = smul.addr %s222, 8
        %s224 = scalar_lea.vmem [#allocation2], %s223
        // Predicated region
        $region37: #{tpu_custom_call.1} parent=35 // pred_check
          %p225 = pneg %p45
        $region38: #{tpu_custom_call.1} parent=35 // pred_check_branch
          %227 = sbr.rel (%p225) target = $region40
        $region39: #{tpu_custom_call.1} parent=35 // pred_region
          %228 = dma.done %s221, 128
        $region40: #{tpu_custom_call.1} parent=35 // pred_fallthru
          _
        %s229 = sand.u32 %s24, 1
        %s230 = scalar_lea.sflag [#allocation6], %s229
        %s231 = sand.u32 %s58, 1
        %s232 = smul.addr %s231, 16
        %s233 = scalar_lea.vmem [#allocation5], %s232
        // Predicated region
        $region41: #{tpu_custom_call.1} parent=35 // pred_check
          %p234 = pneg %p71
        $region42: #{tpu_custom_call.1} parent=35 // pred_check_branch
          %236 = sbr.rel (%p234) target = $region44
        $region43: #{tpu_custom_call.1} parent=35 // pred_region
          %237 = dma.done %s230, 256
        $region44: #{tpu_custom_call.1} parent=35 // pred_fallthru
          _
        // Predicated region
        $region45: #{tpu_custom_call.1} parent=35 // pred_check
          %p238 = pneg %p92
        $region46: #{tpu_custom_call.1} parent=35 // pred_check_branch
          %240 = sbr.rel (%p238) target = $region48
        $region47: #{tpu_custom_call.1} parent=35 // pred_region
          %241 = dma.done [#allocation6], 1024
        $region48: #{tpu_custom_call.1} parent=35 // pred_fallthru
          _
        %s242 = sand.u32 %s32, 1
        %s243 = scalar_lea.sflag [#allocation3], %s242
        %s244 = sand.u32 %s32, 1
        %s245 = smul.addr %s244, 8
        %s246 = scalar_lea.vmem [#allocation2], %s245
        %p247 = pneg %p45
        %p248 = pneg %p42
        %s249 = sand.u32 %s24, 1
        %s250 = scalar_lea.sflag [#allocation6], %s249
        %s251 = sand.u32 %s58, 1
        %s252 = smul.addr %s251, 16
        %s253 = scalar_lea.vmem [#allocation5], %s252
        %p254 = pneg %p71
        %p255 = pneg %p68
        %p256 = pneg %p92
        %p257 = pneg %p89
        %p258 = pneg %p113
        %p259 = pneg %p110
        %p260 = pneg %p139
        %p261 = pneg %p136
        %s262 = sand.u32 %s126, 1
        %s263 = scalar_lea.sflag [#allocation4], %s262
        %s264 = sand.u32 %s126, 1
        %s265 = smul.addr %s264, 8
        %s266 = scalar_lea.vmem [#allocation8], %s265
        %v268 = vld [vmem:[%s224] sm:$0xff]
        %v269 = vpack.c.bf16 %v268, %v268
        %v270 = vld [vmem:[#allocation7] sm:$0xf]
        %v271 = vld [vmem:[#allocation7 + $0x4] sm:$0xf]
        %v272 = vld [vmem:[#allocation7 + $0x8] sm:$0xf]
        %v273 = vld [vmem:[#allocation7 + $0xc] sm:$0xf]
        %v278 = vunpack.c.l.b16 %v270
        %v279 = vunpack.c.l.b16 %v271
        %v280 = vunpack.c.l.b16 %v272
        %v281 = vunpack.c.l.b16 %v273
        %v282 = vpack.c.b16 %v279, %v278
        %v283 = vpack.c.b16 %v281, %v280
        %vm286 = vcmask 261120
        %v288 = vsel %vm286, %v269, 0
        %290 = vmatprep.subr.bf16.mxu0 0
        %291 = vmatpush1.bf16.msra.mxu0 %v282
        %292 = vmatprep.subr.bf16.mxu0 0
        %293 = vmatpush1.bf16.msra.mxu0 %v283
        %294 = vmatprep.subr.bf16.mxu0 0
        %295 = vmatpush1.bf16.msra.mxu0 0
        %296 = vmatprep.subr.bf16.mxu0 0
        %297 = vmatpush1.bf16.msra.mxu0 0
        %298 = vmatprep.subr.bf16.mxu0 0
        %299 = vmatpush1.bf16.msra.mxu0 0
        %300 = vmatprep.subr.bf16.mxu0 0
        %301 = vmatpush1.bf16.msra.mxu0 0
        %302 = vmatprep.subr.bf16.mxu0 0
        %303 = vmatpush1.bf16.msra.mxu0 0
        %304 = vmatprep.subr.bf16.mxu0 0
        %305 = vmatpush1.bf16.msra.mxu0 0
        %306 = vmatprep.subr.bf16.mxu0 0
        %307 = vmatpush1.bf16.msra.mxu0 0
        %308 = vmatprep.subr.bf16.mxu0 0
        %309 = vmatpush1.bf16.msra.mxu0 0
        %310 = vmatprep.subr.bf16.mxu0 0
        %311 = vmatpush1.bf16.msra.mxu0 0
        %312 = vmatprep.subr.bf16.mxu0 0
        %313 = vmatpush1.bf16.msra.mxu0 0
        %314 = vmatprep.subr.bf16.mxu0 0
        %315 = vmatpush1.bf16.msra.mxu0 0
        %316 = vmatprep.subr.bf16.mxu0 0
        %317 = vmatpush1.bf16.msra.mxu0 0
        %318 = vmatprep.subr.bf16.mxu0 0
        %319 = vmatpush1.bf16.msra.mxu0 0
        %320 = vmatprep.subr.bf16.mxu0 0
        %321 = vmatpush1.bf16.msra.mxu0 0
        %322 = vmatprep.mubr.bf16.mxu0 0
        %323 = vmatmul.mubr.bf16.gmra.mrb[0].mxu0 %v288
        %v324 = vpop.f32.mrb[0].mxu0
        %v325 = vadd.f32 0.0, %v324
        %v326 = vpop.f32.mrb[0].mxu0
        %v327 = vpop.f32.mrb[0].mxu0
        %v328 = vpop.f32.mrb[0].mxu0
        %329 = vdwg.mxu0
        %331 = vrot.lane.b32.xlu0 %v325, 96
        %v332 = vpop.permute.xlu0 %331
        %v334 = vpack.c.bf16 %v332, %v325
        %v335 = vld [vmem:[%s233] sm:$0xf]
        %336 = vrot.lane.b32.xlu0 %v325, 64
        %v337 = vpop.permute.xlu0 %336
        %vm339 = vcmask 130048
        %v341 = vsel %vm339, %v335, 0
        %343 = vmatprep.subr.bf16.mxu0 0
        %344 = vmatpush1.bf16.msra.mxu0 %v334
        %345 = vmatprep.subr.bf16.mxu0 0
        %346 = vmatpush1.bf16.msra.mxu0 0
        %347 = vmatprep.subr.bf16.mxu0 0
        %348 = vmatpush1.bf16.msra.mxu0 0
        %349 = vmatprep.subr.bf16.mxu0 0
        %350 = vmatpush1.bf16.msra.mxu0 0
        %351 = vmatprep.subr.bf16.mxu0 0
        %352 = vmatpush1.bf16.msra.mxu0 0
        %353 = vmatprep.subr.bf16.mxu0 0
        %354 = vmatpush1.bf16.msra.mxu0 0
        %355 = vmatprep.subr.bf16.mxu0 0
        %356 = vmatpush1.bf16.msra.mxu0 0
        %357 = vmatprep.subr.bf16.mxu0 0
        %358 = vmatpush1.bf16.msra.mxu0 0
        %359 = vmatprep.subr.bf16.mxu0 0
        %360 = vmatpush1.bf16.msra.mxu0 0
        %361 = vmatprep.subr.bf16.mxu0 0
        %362 = vmatpush1.bf16.msra.mxu0 0
        %363 = vmatprep.subr.bf16.mxu0 0
        %364 = vmatpush1.bf16.msra.mxu0 0
        %365 = vmatprep.subr.bf16.mxu0 0
        %366 = vmatpush1.bf16.msra.mxu0 0
        %367 = vmatprep.subr.bf16.mxu0 0
        %368 = vmatpush1.bf16.msra.mxu0 0
        %369 = vmatprep.subr.bf16.mxu0 0
        %370 = vmatpush1.bf16.msra.mxu0 0
        %371 = vmatprep.subr.bf16.mxu0 0
        %372 = vmatpush1.bf16.msra.mxu0 0
        %373 = vmatprep.subr.bf16.mxu0 0
        %374 = vmatpush1.bf16.msra.mxu0 0
        %375 = vmatprep.mubr.bf16.mxu0 0
        %376 = vmatmul.mubr.bf16.gmra.mrb[0].mxu0 %v341
        %v377 = vpop.f32.mrb[0].mxu0
        %v378 = vadd.f32 %v337, %v377
        %v379 = vpop.f32.mrb[0].mxu0
        %v380 = vpop.f32.mrb[0].mxu0
        %v381 = vpop.f32.mrb[0].mxu0
        %382 = vdwg.mxu0
        %v383 = vld [vmem:[%s3] sm:$0x1]
        %v385 = vlaneseq
        %v386 = vshrl.u32 %v385, 7
        %v387 = vsub.s32 0, %v386
        %v388 = vrot.slane %v383, %v387
        %v390 = vadd.f32 %v378, %v388
        %v391 = vtanh.pop %v390
        %v392 = vpack.c.bf16 %v391, %v391
        %s393 = scalar_lea.vmem [#allocation7], 16
        %v394 = vld [vmem:[%s393] sm:$0xf]
        %v395 = vld [vmem:[%s393 + $0x4] sm:$0xf]
        %v396 = vld [vmem:[%s393 + $0x8] sm:$0xf]
        %v397 = vld [vmem:[%s393 + $0xc] sm:$0xf]
        %v402 = vunpack.c.l.b16 %v394
        %v403 = vunpack.c.l.b16 %v395
        %v404 = vunpack.c.l.b16 %v396
        %v405 = vunpack.c.l.b16 %v397
        %v406 = vpack.c.b16 %v403, %v402
        %v407 = vpack.c.b16 %v405, %v404
        %v411 = vsel %vm286, %v392, 0
        %413 = vmatprep.subr.bf16.mxu0 0
        %414 = vmatpush1.bf16.msra.mxu0 %v406
        %415 = vmatprep.subr.bf16.mxu0 0
        %416 = vmatpush1.bf16.msra.mxu0 %v407
        %417 = vmatprep.subr.bf16.mxu0 0
        %418 = vmatpush1.bf16.msra.mxu0 0
        %419 = vmatprep.subr.bf16.mxu0 0
        %420 = vmatpush1.bf16.msra.mxu0 0
        %421 = vmatprep.subr.bf16.mxu0 0
        %422 = vmatpush1.bf16.msra.mxu0 0
        %423 = vmatprep.subr.bf16.mxu0 0
        %424 = vmatpush1.bf16.msra.mxu0 0
        %425 = vmatprep.subr.bf16.mxu0 0
        %426 = vmatpush1.bf16.msra.mxu0 0
        %427 = vmatprep.subr.bf16.mxu0 0
        %428 = vmatpush1.bf16.msra.mxu0 0
        %429 = vmatprep.subr.bf16.mxu0 0
        %430 = vmatpush1.bf16.msra.mxu0 0
        %431 = vmatprep.subr.bf16.mxu0 0
        %432 = vmatpush1.bf16.msra.mxu0 0
        %433 = vmatprep.subr.bf16.mxu0 0
        %434 = vmatpush1.bf16.msra.mxu0 0
        %435 = vmatprep.subr.bf16.mxu0 0
        %436 = vmatpush1.bf16.msra.mxu0 0
        %437 = vmatprep.subr.bf16.mxu0 0
        %438 = vmatpush1.bf16.msra.mxu0 0
        %439 = vmatprep.subr.bf16.mxu0 0
        %440 = vmatpush1.bf16.msra.mxu0 0
        %441 = vmatprep.subr.bf16.mxu0 0
        %442 = vmatpush1.bf16.msra.mxu0 0
        %443 = vmatprep.subr.bf16.mxu0 0
        %444 = vmatpush1.bf16.msra.mxu0 0
        %445 = vmatprep.mubr.bf16.mxu0 0
        %446 = vmatmul.mubr.bf16.gmra.mrb[0].mxu0 %v411
        %v447 = vpop.f32.mrb[0].mxu0
        %v448 = vadd.f32 0.0, %v447
        %v449 = vpop.f32.mrb[0].mxu0
        %v450 = vpop.f32.mrb[0].mxu0
        %v451 = vpop.f32.mrb[0].mxu0
        %452 = vdwg.mxu0
        %454 = vrot.lane.b32.xlu0 %v448, 96
        %v455 = vpop.permute.xlu0 %454
        %v457 = vpack.c.bf16 %v455, %v448
        %s458 = scalar_lea.vmem %s233, 4 [#allocation5]
        %v459 = vld [vmem:[%s458] sm:$0xf]
        %460 = vrot.lane.b32.xlu0 %v448, 64
        %v461 = vpop.permute.xlu0 %460
        %v464 = vsel %vm339, %v459, 0
        %466 = vmatprep.subr.bf16.mxu0 0
        %467 = vmatpush1.bf16.msra.mxu0 %v457
        %468 = vmatprep.subr.bf16.mxu0 0
        %469 = vmatpush1.bf16.msra.mxu0 0
        %470 = vmatprep.subr.bf16.mxu0 0
        %471 = vmatpush1.bf16.msra.mxu0 0
        %472 = vmatprep.subr.bf16.mxu0 0
        %473 = vmatpush1.bf16.msra.mxu0 0
        %474 = vmatprep.subr.bf16.mxu0 0
        %475 = vmatpush1.bf16.msra.mxu0 0
        %476 = vmatprep.subr.bf16.mxu0 0
        %477 = vmatpush1.bf16.msra.mxu0 0
        %478 = vmatprep.subr.bf16.mxu0 0
        %479 = vmatpush1.bf16.msra.mxu0 0
        %480 = vmatprep.subr.bf16.mxu0 0
        %481 = vmatpush1.bf16.msra.mxu0 0
        %482 = vmatprep.subr.bf16.mxu0 0
        %483 = vmatpush1.bf16.msra.mxu0 0
        %484 = vmatprep.subr.bf16.mxu0 0
        %485 = vmatpush1.bf16.msra.mxu0 0
        %486 = vmatprep.subr.bf16.mxu0 0
        %487 = vmatpush1.bf16.msra.mxu0 0
        %488 = vmatprep.subr.bf16.mxu0 0
        %489 = vmatpush1.bf16.msra.mxu0 0
        %490 = vmatprep.subr.bf16.mxu0 0
        %491 = vmatpush1.bf16.msra.mxu0 0
        %492 = vmatprep.subr.bf16.mxu0 0
        %493 = vmatpush1.bf16.msra.mxu0 0
        %494 = vmatprep.subr.bf16.mxu0 0
        %495 = vmatpush1.bf16.msra.mxu0 0
        %496 = vmatprep.subr.bf16.mxu0 0
        %497 = vmatpush1.bf16.msra.mxu0 0
        %498 = vmatprep.mubr.bf16.mxu0 0
        %499 = vmatmul.mubr.bf16.gmra.mrb[0].mxu0 %v464
        %v500 = vpop.f32.mrb[0].mxu0
        %v501 = vadd.f32 %v461, %v500
        %v502 = vpop.f32.mrb[0].mxu0
        %v503 = vpop.f32.mrb[0].mxu0
        %v504 = vpop.f32.mrb[0].mxu0
        %505 = vdwg.mxu0
        %s506 = scalar_lea.vmem %s3, 1
        %v507 = vld [vmem:[%s506] sm:$0x1]
        %v509 = vlaneseq
        %v510 = vshrl.u32 %v509, 7
        %v511 = vsub.s32 0, %v510
        %v512 = vrot.slane %v507, %v511
        %v514 = vadd.f32 %v501, %v512
        %v515 = vtanh.pop %v514
        %v516 = vpack.c.bf16 %v515, %v515
        %s517 = scalar_lea.vmem [#allocation7], 32
        %v518 = vld [vmem:[%s517] sm:$0xf]
        %v519 = vld [vmem:[%s517 + $0x4] sm:$0xf]
        %v520 = vld [vmem:[%s517 + $0x8] sm:$0xf]
        %v521 = vld [vmem:[%s517 + $0xc] sm:$0xf]
        %v526 = vunpack.c.l.b16 %v518
        %v527 = vunpack.c.l.b16 %v519
        %v528 = vunpack.c.l.b16 %v520
        %v529 = vunpack.c.l.b16 %v521
        %v530 = vpack.c.b16 %v527, %v526
        %v531 = vpack.c.b16 %v529, %v528
        %v535 = vsel %vm286, %v516, 0
        %537 = vmatprep.subr.bf16.mxu0 0
        %538 = vmatpush1.bf16.msra.mxu0 %v530
        %539 = vmatprep.subr.bf16.mxu0 0
        %540 = vmatpush1.bf16.msra.mxu0 %v531
        %541 = vmatprep.subr.bf16.mxu0 0
        %542 = vmatpush1.bf16.msra.mxu0 0
        %543 = vmatprep.subr.bf16.mxu0 0
        %544 = vmatpush1.bf16.msra.mxu0 0
        %545 = vmatprep.subr.bf16.mxu0 0
        %546 = vmatpush1.bf16.msra.mxu0 0
        %547 = vmatprep.subr.bf16.mxu0 0
        %548 = vmatpush1.bf16.msra.mxu0 0
        %549 = vmatprep.subr.bf16.mxu0 0
        %550 = vmatpush1.bf16.msra.mxu0 0
        %551 = vmatprep.subr.bf16.mxu0 0
        %552 = vmatpush1.bf16.msra.mxu0 0
        %553 = vmatprep.subr.bf16.mxu0 0
        %554 = vmatpush1.bf16.msra.mxu0 0
        %555 = vmatprep.subr.bf16.mxu0 0
        %556 = vmatpush1.bf16.msra.mxu0 0
        %557 = vmatprep.subr.bf16.mxu0 0
        %558 = vmatpush1.bf16.msra.mxu0 0
        %559 = vmatprep.subr.bf16.mxu0 0
        %560 = vmatpush1.bf16.msra.mxu0 0
        %561 = vmatprep.subr.bf16.mxu0 0
        %562 = vmatpush1.bf16.msra.mxu0 0
        %563 = vmatprep.subr.bf16.mxu0 0
        %564 = vmatpush1.bf16.msra.mxu0 0
        %565 = vmatprep.subr.bf16.mxu0 0
        %566 = vmatpush1.bf16.msra.mxu0 0
        %567 = vmatprep.subr.bf16.mxu0 0
        %568 = vmatpush1.bf16.msra.mxu0 0
        %569 = vmatprep.mubr.bf16.mxu0 0
        %570 = vmatmul.mubr.bf16.gmra.mrb[0].mxu0 %v535
        %v571 = vpop.f32.mrb[0].mxu0
        %v572 = vadd.f32 0.0, %v571
        %v573 = vpop.f32.mrb[0].mxu0
        %v574 = vpop.f32.mrb[0].mxu0
        %v575 = vpop.f32.mrb[0].mxu0
        %576 = vdwg.mxu0
        %578 = vrot.lane.b32.xlu0 %v572, 96
        %v579 = vpop.permute.xlu0 %578
        %v581 = vpack.c.bf16 %v579, %v572
        %s582 = scalar_lea.vmem %s233, 8 [#allocation5]
        %v583 = vld [vmem:[%s582] sm:$0xf]
        %584 = vrot.lane.b32.xlu0 %v572, 64
        %v585 = vpop.permute.xlu0 %584
        %v588 = vsel %vm339, %v583, 0
        %590 = vmatprep.subr.bf16.mxu0 0
        %591 = vmatpush1.bf16.msra.mxu0 %v581
        %592 = vmatprep.subr.bf16.mxu0 0
        %593 = vmatpush1.bf16.msra.mxu0 0
        %594 = vmatprep.subr.bf16.mxu0 0
        %595 = vmatpush1.bf16.msra.mxu0 0
        %596 = vmatprep.subr.bf16.mxu0 0
        %597 = vmatpush1.bf16.msra.mxu0 0
        %598 = vmatprep.subr.bf16.mxu0 0
        %599 = vmatpush1.bf16.msra.mxu0 0
        %600 = vmatprep.subr.bf16.mxu0 0
        %601 = vmatpush1.bf16.msra.mxu0 0
        %602 = vmatprep.subr.bf16.mxu0 0
        %603 = vmatpush1.bf16.msra.mxu0 0
        %604 = vmatprep.subr.bf16.mxu0 0
        %605 = vmatpush1.bf16.msra.mxu0 0
        %606 = vmatprep.subr.bf16.mxu0 0
        %607 = vmatpush1.bf16.msra.mxu0 0
        %608 = vmatprep.subr.bf16.mxu0 0
        %609 = vmatpush1.bf16.msra.mxu0 0
        %610 = vmatprep.subr.bf16.mxu0 0
        %611 = vmatpush1.bf16.msra.mxu0 0
        %612 = vmatprep.subr.bf16.mxu0 0
        %613 = vmatpush1.bf16.msra.mxu0 0
        %614 = vmatprep.subr.bf16.mxu0 0
        %615 = vmatpush1.bf16.msra.mxu0 0
        %616 = vmatprep.subr.bf16.mxu0 0
        %617 = vmatpush1.bf16.msra.mxu0 0
        %618 = vmatprep.subr.bf16.mxu0 0
        %619 = vmatpush1.bf16.msra.mxu0 0
        %620 = vmatprep.subr.bf16.mxu0 0
        %621 = vmatpush1.bf16.msra.mxu0 0
        %622 = vmatprep.mubr.bf16.mxu0 0
        %623 = vmatmul.mubr.bf16.gmra.mrb[0].mxu0 %v588
        %v624 = vpop.f32.mrb[0].mxu0
        %v625 = vadd.f32 %v585, %v624
        %v626 = vpop.f32.mrb[0].mxu0
        %v627 = vpop.f32.mrb[0].mxu0
        %v628 = vpop.f32.mrb[0].mxu0
        %629 = vdwg.mxu0
        %s630 = scalar_lea.vmem %s3, 2
        %v631 = vld [vmem:[%s630] sm:$0x1]
        %v633 = vlaneseq
        %v634 = vshrl.u32 %v633, 7
        %v635 = vsub.s32 0, %v634
        %v636 = vrot.slane %v631, %v635
        %v638 = vadd.f32 %v625, %v636
        %v639 = vtanh.pop %v638
        %v640 = vpack.c.bf16 %v639, %v639
        %s641 = scalar_lea.vmem [#allocation7], 48
        %v642 = vld [vmem:[%s641] sm:$0xf]
        %v643 = vld [vmem:[%s641 + $0x4] sm:$0xf]
        %v644 = vld [vmem:[%s641 + $0x8] sm:$0xf]
        %v645 = vld [vmem:[%s641 + $0xc] sm:$0xf]
        %v650 = vunpack.c.l.b16 %v642
        %v651 = vunpack.c.l.b16 %v643
        %v652 = vunpack.c.l.b16 %v644
        %v653 = vunpack.c.l.b16 %v645
        %v654 = vpack.c.b16 %v651, %v650
        %v655 = vpack.c.b16 %v653, %v652
        %v659 = vsel %vm286, %v640, 0
        %661 = vmatprep.subr.bf16.mxu0 0
        %662 = vmatpush1.bf16.msra.mxu0 %v654
        %663 = vmatprep.subr.bf16.mxu0 0
        %664 = vmatpush1.bf16.msra.mxu0 %v655
        %665 = vmatprep.subr.bf16.mxu0 0
        %666 = vmatpush1.bf16.msra.mxu0 0
        %667 = vmatprep.subr.bf16.mxu0 0
        %668 = vmatpush1.bf16.msra.mxu0 0
        %669 = vmatprep.subr.bf16.mxu0 0
        %670 = vmatpush1.bf16.msra.mxu0 0
        %671 = vmatprep.subr.bf16.mxu0 0
        %672 = vmatpush1.bf16.msra.mxu0 0
        %673 = vmatprep.subr.bf16.mxu0 0
        %674 = vmatpush1.bf16.msra.mxu0 0
        %675 = vmatprep.subr.bf16.mxu0 0
        %676 = vmatpush1.bf16.msra.mxu0 0
        %677 = vmatprep.subr.bf16.mxu0 0
        %678 = vmatpush1.bf16.msra.mxu0 0
        %679 = vmatprep.subr.bf16.mxu0 0
        %680 = vmatpush1.bf16.msra.mxu0 0
        %681 = vmatprep.subr.bf16.mxu0 0
        %682 = vmatpush1.bf16.msra.mxu0 0
        %683 = vmatprep.subr.bf16.mxu0 0
        %684 = vmatpush1.bf16.msra.mxu0 0
        %685 = vmatprep.subr.bf16.mxu0 0
        %686 = vmatpush1.bf16.msra.mxu0 0
        %687 = vmatprep.subr.bf16.mxu0 0
        %688 = vmatpush1.bf16.msra.mxu0 0
        %689 = vmatprep.subr.bf16.mxu0 0
        %690 = vmatpush1.bf16.msra.mxu0 0
        %691 = vmatprep.subr.bf16.mxu0 0
        %692 = vmatpush1.bf16.msra.mxu0 0
        %693 = vmatprep.mubr.bf16.mxu0 0
        %694 = vmatmul.mubr.bf16.gmra.mrb[0].mxu0 %v659
        %v695 = vpop.f32.mrb[0].mxu0
        %v696 = vadd.f32 0.0, %v695
        %v697 = vpop.f32.mrb[0].mxu0
        %v698 = vpop.f32.mrb[0].mxu0
        %v699 = vpop.f32.mrb[0].mxu0
        %700 = vdwg.mxu0
        %702 = vrot.lane.b32.xlu0 %v696, 96
        %v703 = vpop.permute.xlu0 %702
        %v705 = vpack.c.bf16 %v703, %v696
        %s706 = scalar_lea.vmem %s233, 12 [#allocation5]
        %v707 = vld [vmem:[%s706] sm:$0xf]
        %708 = vrot.lane.b32.xlu0 %v696, 64
        %v709 = vpop.permute.xlu0 %708
        %v712 = vsel %vm339, %v707, 0
        %714 = vmatprep.subr.bf16.mxu0 0
        %715 = vmatpush1.bf16.msra.mxu0 %v705
        %716 = vmatprep.subr.bf16.mxu0 0
        %717 = vmatpush1.bf16.msra.mxu0 0
        %718 = vmatprep.subr.bf16.mxu0 0
        %719 = vmatpush1.bf16.msra.mxu0 0
        %720 = vmatprep.subr.bf16.mxu0 0
        %721 = vmatpush1.bf16.msra.mxu0 0
        %722 = vmatprep.subr.bf16.mxu0 0
        %723 = vmatpush1.bf16.msra.mxu0 0
        %724 = vmatprep.subr.bf16.mxu0 0
        %725 = vmatpush1.bf16.msra.mxu0 0
        %726 = vmatprep.subr.bf16.mxu0 0
        %727 = vmatpush1.bf16.msra.mxu0 0
        %728 = vmatprep.subr.bf16.mxu0 0
        %729 = vmatpush1.bf16.msra.mxu0 0
        %730 = vmatprep.subr.bf16.mxu0 0
        %731 = vmatpush1.bf16.msra.mxu0 0
        %732 = vmatprep.subr.bf16.mxu0 0
        %733 = vmatpush1.bf16.msra.mxu0 0
        %734 = vmatprep.subr.bf16.mxu0 0
        %735 = vmatpush1.bf16.msra.mxu0 0
        %736 = vmatprep.subr.bf16.mxu0 0
        %737 = vmatpush1.bf16.msra.mxu0 0
        %738 = vmatprep.subr.bf16.mxu0 0
        %739 = vmatpush1.bf16.msra.mxu0 0
        %740 = vmatprep.subr.bf16.mxu0 0
        %741 = vmatpush1.bf16.msra.mxu0 0
        %742 = vmatprep.subr.bf16.mxu0 0
        %743 = vmatpush1.bf16.msra.mxu0 0
        %744 = vmatprep.subr.bf16.mxu0 0
        %745 = vmatpush1.bf16.msra.mxu0 0
        %746 = vmatprep.mubr.bf16.mxu0 0
        %747 = vmatmul.mubr.bf16.gmra.mrb[0].mxu0 %v712
        %v748 = vpop.f32.mrb[0].mxu0
        %v749 = vadd.f32 %v709, %v748
        %v750 = vpop.f32.mrb[0].mxu0
        %v751 = vpop.f32.mrb[0].mxu0
        %v752 = vpop.f32.mrb[0].mxu0
        %753 = vdwg.mxu0
        %s754 = scalar_lea.vmem %s3, 3
        %v755 = vld [vmem:[%s754] sm:$0x1]
        %v757 = vlaneseq
        %v758 = vshrl.u32 %v757, 7
        %v759 = vsub.s32 0, %v758
        %v760 = vrot.slane %v755, %v759
        %v762 = vadd.f32 %v749, %v760
        %v763 = vtanh.pop %v762
        %765 = vrot.lane.b32.xlu0 %v515, 32
        %v766 = vpop.permute.xlu0 %765
        %769 = vrot.lane.b32.xlu0 %v639, 64
        %v770 = vpop.permute.xlu0 %769
        %773 = vrot.lane.b32.xlu0 %v763, 96
        %v774 = vpop.permute.xlu0 %773
        %v776 = vsel %vm286, %v391, %v766
        %vm777 = vcmask 523264
        %v778 = vsel %vm777, %v776, %v770
        %vm779 = vcmask 785408
        %v780 = vsel %vm779, %v778, %v774
        %781 = vst [vmem:[%s266] sm:$0xff] %v780
        %s782 = sand.u32 %s126, 1
        %s783 = scalar_lea.sflag [#allocation4], %s782
        %s784 = sand.u32 %s126, 1
        %s785 = smul.addr %s784, 8
        %s786 = scalar_lea.vmem [#allocation8], %s785
        // Predicated region
        $region49: #{tpu_custom_call.1} parent=35 // pred_check
          %p787 = pneg %p136
        $region50: #{tpu_custom_call.1} parent=35 // pred_check_branch
          %789 = sbr.rel (%p787) target = $region52
        $region51: #{tpu_custom_call.1} parent=35 // pred_region
          %s791 = ssub.s32 128, 128
          %792 = vsyncadd %s783, %s791
          %s793 = smul.addr %s24, 128
          %s794 = scalar_lea.hbm %s4, %s793
          %s796 = sshll.u32 %s786, 4
          %s797 = int_to_ptr.vmem [resolvable:$true] %s796
          %799 = dma.vmem_to_hbm [thread:$0]  %s797, 128, %s794, %s783
        $region52: #{tpu_custom_call.1} parent=35 // pred_fallthru
          _
      $region36: #{tpu_custom_call.1} parent=5 // pred_fallthru
        _
      %p800 = scmp.le.s32.totalorder 2, %s19
      // Predicated region
      $region53: #{tpu_custom_call.1} parent=5 // pred_check
        %p801 = pneg %p800
      $region54: #{tpu_custom_call.1} parent=5 // pred_check_branch
        %803 = sbr.rel (%p801) target = $region56
      $region55: #{tpu_custom_call.1} parent=5 // pred_region
        %s804 = ssub.s32 %s19, 2
        // Predicated region
        $region57: #{tpu_custom_call.1} parent=55 // pred_check
          %p805 = pneg %p142
        $region58: #{tpu_custom_call.1} parent=55 // pred_check_branch
          %807 = sbr.rel (%p805) target = $region60
        $region59: #{tpu_custom_call.1} parent=55 // pred_region
          %s808 = sand.u32 %s127, 1
          %s809 = scalar_lea.sflag [#allocation4], %s808
          %s810 = sand.u32 %s127, 1
          %s811 = smul.addr %s810, 8
          %s812 = scalar_lea.vmem [#allocation8], %s811
          %813 = dma.done %s809, 128
        $region60: #{tpu_custom_call.1} parent=55 // pred_fallthru
          _
      $region56: #{tpu_custom_call.1} parent=5 // pred_fallthru
        _
    $region6: #{tpu_custom_call.1} parent=1 // loop_footer
      %s23 = sadd.s32 1, %s19
    $region7: #{tpu_custom_call.1} parent=1 // loop_footer_branch
      %18 = sbr.rel target = $region3
    $region8: #{tpu_custom_call.1} parent=1 // loop_exit
      _
    %814 = vsyncpa [#allocation3], 1
    %s815 = scalar_lea.sflag [#allocation3], 1
    %816 = vsyncpa %s815, 1
    %817 = vsyncpa [#allocation6], 1
    %s818 = scalar_lea.sflag [#allocation6], 1
    %819 = vsyncpa %s818, 1
    %820 = vsyncpa [#allocation4], 1
    %s821 = scalar_lea.sflag [#allocation4], 1
    %822 = vsyncpa %s821, 1

</llo_original>
